<compile_context>
chip_gen: v6e
topology: v6e:2x2x1
jax: 0.10.0
libtpu: 0.0.40
codegen_flags: <defaults>
</compile_context>

<pallas_src>
import math

import jax
import jax.numpy as jnp
from jax.experimental import pallas as pl
from jax.experimental.pallas import tpu as pltpu

LANE = 128
NEG_SLOPE = 0.01  # F.leaky_relu default negative_slope


def _leaky_relu(x):
    return jnp.where(x > 0, x, NEG_SLOPE * x)


def _softplus(x):
    # numerically stable softplus: log(1 + exp(x))
    return jnp.maximum(x, 0.0) + jnp.log1p(jnp.exp(-jnp.abs(x)))


def _round_up(n, m):
    return ((n + m - 1) // m) * m


def _pad_weight(w):
    """(in, out) -> zero-padded (128, 128)."""
    in_dim, out_dim = w.shape
    assert in_dim <= LANE and out_dim <= LANE, "layer wider than one lane tile"
    return jnp.zeros((LANE, LANE), jnp.float32).at[:in_dim, :out_dim].set(w)


def _pad_bias(b):
    """(1, out) -> zero-padded (128,)."""
    out_dim = b.shape[-1]
    return jnp.zeros((LANE,), jnp.float32).at[:out_dim].set(b.reshape(-1))


def _make_kernel(n_enc_hidden, n_dec):
    """Fused priorVAE forward over one (TB, 128) batch tile.

    Weight slab layout (first axis):
      [0 .. n_enc_hidden)                 encoder hidden layers (leaky_relu)
      [n_enc_hidden]                      encoder head -> mu
      [n_enc_hidden + 1]                  encoder head -> log_var
      [n_enc_hidden + 2 .. +2+n_dec)      decoder layers (leaky_relu)
      [n_enc_hidden + 2 + n_dec]          final layer (softplus)
    """
    i_mu = n_enc_hidden
    i_lv = n_enc_hidden + 1
    dec_start = n_enc_hidden + 2
    i_final = dec_start + n_dec

    def kernel(x_ref, eps_ref, w_ref, b_ref, out_ref):
        h = x_ref[...]                                   # (TB, 128), f32

        # ---- Encoder hidden layers (statically unrolled; weights resident) ----
        for li in range(n_enc_hidden):
            y = jnp.dot(h, w_ref[li], preferred_element_type=jnp.float32)
            h = _leaky_relu(y + b_ref[li:li + 1, :])

        # ---- Encoder head (mu / log_var as separate lane-aligned matmuls) ----
        mu = jnp.dot(h, w_ref[i_mu], preferred_element_type=jnp.float32) \
            + b_ref[i_mu:i_mu + 1, :]
        log_var = jnp.dot(h, w_ref[i_lv], preferred_element_type=jnp.float32) \
            + b_ref[i_lv:i_lv + 1, :]

        # ---- Reparameterization (f32 elementwise; EUP exp) ----
        # Padded lanes: log_var == 0 -> exp == 1, eps == 0 -> z padded stays 0.
        z = mu + eps_ref[...] * jnp.exp(0.5 * log_var)

        # ---- Decoder ----
        h = z
        for li in range(dec_start, dec_start + n_dec):
            y = jnp.dot(h, w_ref[li], preferred_element_type=jnp.float32)
            h = _leaky_relu(y + b_ref[li:li + 1, :])

        rec = jnp.dot(h, w_ref[i_final], preferred_element_type=jnp.float32) \
            + b_ref[i_final:i_final + 1, :]
        out_ref[...] = _softplus(rec)                    # lane-dense 128-wide store

    return kernel


def priorvae_forward(x, eps, enc_wb, dec_wb, final_wb,
                     n_features_trans, latent_dim, *, batch_tile=256):
    """Runs the fused, batch-tiled priorVAE forward Pallas kernel."""
    B = x.shape[0]
    n_input = final_wb[0].shape[1]
    n_enc = len(enc_wb)
    n_dec = len(dec_wb)
    n_enc_hidden = n_enc - 1

    # ---- Pack all parameters into one weight slab + one bias slab ----
    w_blocks, b_rows = [], []
    for w, b in enc_wb[:-1]:                      # encoder hidden layers
        w_blocks.append(_pad_weight(w))
        b_rows.append(_pad_bias(b))
    w_last, b_last = enc_wb[-1]                   # head split: mu | log_var
    w_blocks.append(_pad_weight(w_last[:, :latent_dim]))
    b_rows.append(_pad_bias(b_last[:, :latent_dim]))
    w_blocks.append(_pad_weight(w_last[:, latent_dim:2 * latent_dim]))
    b_rows.append(_pad_bias(b_last[:, latent_dim:2 * latent_dim]))
    for w, b in dec_wb:                           # decoder layers
        w_blocks.append(_pad_weight(w))
        b_rows.append(_pad_bias(b))
    w_blocks.append(_pad_weight(final_wb[0]))     # final layer
    b_rows.append(_pad_bias(final_wb[1]))

    n_params = len(w_blocks)
    w_slab = jnp.stack(w_blocks)                                # (P, 128, 128)
    n_b_rows = _round_up(n_params, 8)                           # sublane-pad bias slab
    b_slab = jnp.zeros((n_b_rows, LANE), jnp.float32)
    b_slab = b_slab.at[:n_params].set(jnp.stack(b_rows))        # (8k, 128)

    # ---- Lane-dense, batch-tiled inputs / output ----
    TB = batch_tile if B >= batch_tile else _round_up(max(B, 8), 8)
    B_pad = _round_up(B, TB)
    x_in = jnp.zeros((B_pad, LANE), jnp.float32)
    x_in = x_in.at[:B, :n_features_trans].set(x[:, :n_features_trans])
    eps_in = jnp.zeros((B_pad, LANE), jnp.float32)
    eps_in = eps_in.at[:B, :latent_dim].set(eps)

    grid = (B_pad // TB,)
    kernel = _make_kernel(n_enc_hidden, n_dec)

    # advisory scheduling hint for XLA
    flops = 2 * B_pad * n_params * LANE * LANE
    transcendentals = 3 * B_pad * LANE            # exp(reparam) + softplus exp/log1p
    bytes_accessed = 4 * (x_in.size + eps_in.size + w_slab.size
                          + b_slab.size + B_pad * LANE)

    out = pl.pallas_call(
        kernel,
        out_shape=jax.ShapeDtypeStruct((B_pad, LANE), jnp.float32),
        grid_spec=pltpu.PrefetchScalarGridSpec(
            num_scalar_prefetch=0,
            grid=grid,
            in_specs=[
                pl.BlockSpec((TB, LANE), lambda i: (i, 0)),              # x tile
                pl.BlockSpec((TB, LANE), lambda i: (i, 0)),              # eps tile
                pl.BlockSpec((n_params, LANE, LANE), lambda i: (0, 0, 0)),  # weights (resident)
                pl.BlockSpec((n_b_rows, LANE), lambda i: (0, 0)),        # biases (resident)
            ],
            out_specs=pl.BlockSpec((TB, LANE), lambda i: (i, 0)),
        ),
        compiler_params=pltpu.CompilerParams(
            dimension_semantics=("parallel",),
        ),
        cost_estimate=pl.CostEstimate(
            flops=flops,
            transcendentals=transcendentals,
            bytes_accessed=bytes_accessed,
        ),
    )(x_in, eps_in, w_slab, b_slab)

    return out[:B, :n_input]


def _linear_init(key, fan_in, fan_out):
    """Deterministic PyTorch-style Linear init: U(-1/sqrt(fan_in), 1/sqrt(fan_in))."""
    kw, kb = jax.random.split(key)
    bound = 1.0 / math.sqrt(fan_in)
    w = jax.random.uniform(kw, (fan_in, fan_out), jnp.float32, -bound, bound)
    b = jax.random.uniform(kb, (1, fan_out), jnp.float32, -bound, bound)
    return w, b


def _reference_forward(x, eps, enc_wb, dec_wb, final_wb,
                       n_features_trans, latent_dim):
    """Pure-JAX reference mirroring priorVAE.forward."""
    h = x[:, :n_features_trans]
    for w, b in enc_wb[:-1]:
        h = _leaky_relu(h @ w + b)
    head = h @ enc_wb[-1][0] + enc_wb[-1][1]
    mu = head[:, :latent_dim]
    log_var = head[:, latent_dim:2 * latent_dim]
    z = mu + eps * jnp.exp(0.5 * log_var)
    h = z
    for w, b in dec_wb:
        h = _leaky_relu(h @ w + b)
    return _softplus(h @ final_wb[0] + final_wb[1])


if __name__ == "__main__":
    key = jax.random.PRNGKey(0)

    # Model configuration (small, consistent with the module's __init__).
    encoder_config = [32, 16]
    latent_dim = 8
    n_features_path = 4
    n_features_trans = 16
    n_input = n_features_trans           # required by Encoder.forward
    batch = 8
    n_total_features = n_features_trans + 3 * n_features_path  # 28

    keys = jax.random.split(key, 16)

    # Encoder layers: n_input -> 32 -> 16 -> 2*latent_dim
    enc_dims = [n_input] + list(encoder_config) + [2 * latent_dim]
    enc_wb = [
        _linear_init(keys[i], enc_dims[i], enc_dims[i + 1])
        for i in range(len(enc_dims) - 1)
    ]

    # Decoder layers: latent_dim -> reversed(encoder_config); final -> n_input
    decoder_config = encoder_config[::-1]
    dec_dims = [latent_dim] + list(decoder_config)
    dec_wb = [
        _linear_init(keys[5 + i], dec_dims[i], dec_dims[i + 1])
        for i in range(len(dec_dims) - 1)
    ]
    final_wb = _linear_init(keys[10], decoder_config[-1], n_input)

    # Inputs: x packs [trans features | prior_mu | prior_var | prior_log_var].
    kx, keps = jax.random.split(keys[12])
    x = jax.random.normal(kx, (batch, n_total_features), jnp.float32)
    # eps for reparameterization (torch.randn_like equivalent, host-generated
    # for determinism and passed into the kernel).
    eps = jax.random.normal(keps, (batch, latent_dim), jnp.float32)

    out = priorvae_forward(
        x, eps, enc_wb, dec_wb, final_wb, n_features_trans, latent_dim
    )
    jax.block_until_ready(out)

    ref = _reference_forward(
        x, eps, enc_wb, dec_wb, final_wb, n_features_trans, latent_dim
    )
    assert out.shape == (batch, n_input)
    assert bool(jnp.all(jnp.isfinite(out)))
    assert bool(jnp.all(out >= 0.0))  # softplus output is non-negative
    assert bool(jnp.allclose(out, ref, rtol=2e-3, atol=1e-3))
    print("KERNEL_OK")
</pallas_src>

<mosaic_0001>
module attributes {stable_mosaic.version = 11 : i64} {
  func.func @kernel(%arg0: i32, %arg1: memref<8x128xf32, #tpu.memory_space<vmem>>, %arg2: memref<8x128xf32, #tpu.memory_space<vmem>>, %arg3: memref<7x128x128xf32, #tpu.memory_space<vmem>>, %arg4: memref<8x128xf32, #tpu.memory_space<vmem>>, %arg5: memref<8x128xf32, #tpu.memory_space<vmem>>) attributes {dimension_semantics = [#tpu.dimension_semantics<parallel>], iteration_bounds = array<i64: 1>, scalar_prefetch = 0 : i64, scratch_operands = 0 : i64, tpu.core_type = #tpu.core_type<tc>, window_params = [{transform_indices = @transform_0, window_bounds = array<i64: 8, 128>}, {transform_indices = @transform_1, window_bounds = array<i64: 8, 128>}, {pipeline_mode = #tpu.pipeline_mode<synchronous>, transform_indices = @transform_2, window_bounds = array<i64: 7, 128, 128>}, {pipeline_mode = #tpu.pipeline_mode<synchronous>, transform_indices = @transform_3, window_bounds = array<i64: 8, 128>}, {transform_indices = @transform_4, window_bounds = array<i64: 8, 128>}]} {
    %c0 = arith.constant 0 : index
    %c0_0 = arith.constant 0 : index
    %0 = vector.load %arg1[%c0, %c0_0] : memref<8x128xf32, #tpu.memory_space<vmem>>, vector<8x128xf32>
    %c0_1 = arith.constant 0 : index
    %c0_2 = arith.constant 0 : index
    %c0_3 = arith.constant 0 : index
    %1 = vector.load %arg3[%c0_1, %c0_2, %c0_3] : memref<7x128x128xf32, #tpu.memory_space<vmem>>, vector<1x128x128xf32>
    %2 = vector.shape_cast %1 : vector<1x128x128xf32> to vector<128x128xf32>
    %cst = arith.constant dense<0.000000e+00> : vector<8x128xf32>
    %3 = tpu.matmul %0, %2, %cst {dimension_numbers = #tpu.dot_dimension_numbers<[1], [0], [0], [1], [0, 0, 1, 1], [], []>} : vector<8x128xf32>, vector<128x128xf32>, vector<8x128xf32> -> vector<8x128xf32>
    %c0_4 = arith.constant 0 : index
    %c0_5 = arith.constant 0 : index
    %4 = vector.load %arg4[%c0_4, %c0_5] : memref<8x128xf32, #tpu.memory_space<vmem>>, vector<1x128xf32>
    %5 = vector.broadcast %4 : vector<1x128xf32> to vector<8x128xf32>
    %6 = arith.addf %3, %5 : vector<8x128xf32>
    %cst_6 = arith.constant 0.000000e+00 : f32
    %7 = vector.broadcast %cst_6 : f32 to vector<8x128xf32>
    %8 = arith.cmpf ogt, %6, %7 : vector<8x128xf32>
    %cst_7 = arith.constant 0.00999999977 : f32
    %9 = vector.broadcast %cst_7 : f32 to vector<8x128xf32>
    %10 = arith.mulf %9, %6 : vector<8x128xf32>
    %11 = arith.select %8, %6, %10 : vector<8x128xi1>, vector<8x128xf32>
    %c1 = arith.constant 1 : index
    %c0_8 = arith.constant 0 : index
    %c0_9 = arith.constant 0 : index
    %12 = vector.load %arg3[%c1, %c0_8, %c0_9] : memref<7x128x128xf32, #tpu.memory_space<vmem>>, vector<1x128x128xf32>
    %13 = vector.shape_cast %12 : vector<1x128x128xf32> to vector<128x128xf32>
    %cst_10 = arith.constant dense<0.000000e+00> : vector<8x128xf32>
    %14 = tpu.matmul %11, %13, %cst_10 {dimension_numbers = #tpu.dot_dimension_numbers<[1], [0], [0], [1], [0, 0, 1, 1], [], []>} : vector<8x128xf32>, vector<128x128xf32>, vector<8x128xf32> -> vector<8x128xf32>
    %c1_11 = arith.constant 1 : index
    %c0_12 = arith.constant 0 : index
    %15 = vector.load %arg4[%c1_11, %c0_12] : memref<8x128xf32, #tpu.memory_space<vmem>>, vector<1x128xf32>
    %16 = vector.broadcast %15 : vector<1x128xf32> to vector<8x128xf32>
    %17 = arith.addf %14, %16 : vector<8x128xf32>
    %cst_13 = arith.constant 0.000000e+00 : f32
    %18 = vector.broadcast %cst_13 : f32 to vector<8x128xf32>
    %19 = arith.cmpf ogt, %17, %18 : vector<8x128xf32>
    %cst_14 = arith.constant 0.00999999977 : f32
    %20 = vector.broadcast %cst_14 : f32 to vector<8x128xf32>
    %21 = arith.mulf %20, %17 : vector<8x128xf32>
    %22 = arith.select %19, %17, %21 : vector<8x128xi1>, vector<8x128xf32>
    %c2 = arith.constant 2 : index
    %c0_15 = arith.constant 0 : index
    %c0_16 = arith.constant 0 : index
    %23 = vector.load %arg3[%c2, %c0_15, %c0_16] : memref<7x128x128xf32, #tpu.memory_space<vmem>>, vector<1x128x128xf32>
    %24 = vector.shape_cast %23 : vector<1x128x128xf32> to vector<128x128xf32>
    %cst_17 = arith.constant dense<0.000000e+00> : vector<8x128xf32>
    %25 = tpu.matmul %22, %24, %cst_17 {dimension_numbers = #tpu.dot_dimension_numbers<[1], [0], [0], [1], [0, 0, 1, 1], [], []>} : vector<8x128xf32>, vector<128x128xf32>, vector<8x128xf32> -> vector<8x128xf32>
    %c2_18 = arith.constant 2 : index
    %c0_19 = arith.constant 0 : index
    %26 = vector.load %arg4[%c2_18, %c0_19] : memref<8x128xf32, #tpu.memory_space<vmem>>, vector<1x128xf32>
    %27 = vector.broadcast %26 : vector<1x128xf32> to vector<8x128xf32>
    %28 = arith.addf %25, %27 : vector<8x128xf32>
    %c3 = arith.constant 3 : index
    %c0_20 = arith.constant 0 : index
    %c0_21 = arith.constant 0 : index
    %29 = vector.load %arg3[%c3, %c0_20, %c0_21] : memref<7x128x128xf32, #tpu.memory_space<vmem>>, vector<1x128x128xf32>
    %30 = vector.shape_cast %29 : vector<1x128x128xf32> to vector<128x128xf32>
    %cst_22 = arith.constant dense<0.000000e+00> : vector<8x128xf32>
    %31 = tpu.matmul %22, %30, %cst_22 {dimension_numbers = #tpu.dot_dimension_numbers<[1], [0], [0], [1], [0, 0, 1, 1], [], []>} : vector<8x128xf32>, vector<128x128xf32>, vector<8x128xf32> -> vector<8x128xf32>
    %c3_23 = arith.constant 3 : index
    %c0_24 = arith.constant 0 : index
    %32 = vector.load %arg4[%c3_23, %c0_24] : memref<8x128xf32, #tpu.memory_space<vmem>>, vector<1x128xf32>
    %33 = vector.broadcast %32 : vector<1x128xf32> to vector<8x128xf32>
    %34 = arith.addf %31, %33 : vector<8x128xf32>
    %c0_25 = arith.constant 0 : index
    %c0_26 = arith.constant 0 : index
    %35 = vector.load %arg2[%c0_25, %c0_26] : memref<8x128xf32, #tpu.memory_space<vmem>>, vector<8x128xf32>
    %cst_27 = arith.constant 5.000000e-01 : f32
    %36 = vector.broadcast %cst_27 : f32 to vector<8x128xf32>
    %37 = arith.mulf %36, %34 : vector<8x128xf32>
    %38 = math.exp %37 : vector<8x128xf32>
    %39 = arith.mulf %35, %38 : vector<8x128xf32>
    %40 = arith.addf %28, %39 : vector<8x128xf32>
    %c4 = arith.constant 4 : index
    %c0_28 = arith.constant 0 : index
    %c0_29 = arith.constant 0 : index
    %41 = vector.load %arg3[%c4, %c0_28, %c0_29] : memref<7x128x128xf32, #tpu.memory_space<vmem>>, vector<1x128x128xf32>
    %42 = vector.shape_cast %41 : vector<1x128x128xf32> to vector<128x128xf32>
    %cst_30 = arith.constant dense<0.000000e+00> : vector<8x128xf32>
    %43 = tpu.matmul %40, %42, %cst_30 {dimension_numbers = #tpu.dot_dimension_numbers<[1], [0], [0], [1], [0, 0, 1, 1], [], []>} : vector<8x128xf32>, vector<128x128xf32>, vector<8x128xf32> -> vector<8x128xf32>
    %c4_31 = arith.constant 4 : index
    %c0_32 = arith.constant 0 : index
    %44 = vector.load %arg4[%c4_31, %c0_32] : memref<8x128xf32, #tpu.memory_space<vmem>>, vector<1x128xf32>
    %45 = vector.broadcast %44 : vector<1x128xf32> to vector<8x128xf32>
    %46 = arith.addf %43, %45 : vector<8x128xf32>
    %cst_33 = arith.constant 0.000000e+00 : f32
    %47 = vector.broadcast %cst_33 : f32 to vector<8x128xf32>
    %48 = arith.cmpf ogt, %46, %47 : vector<8x128xf32>
    %cst_34 = arith.constant 0.00999999977 : f32
    %49 = vector.broadcast %cst_34 : f32 to vector<8x128xf32>
    %50 = arith.mulf %49, %46 : vector<8x128xf32>
    %51 = arith.select %48, %46, %50 : vector<8x128xi1>, vector<8x128xf32>
    %c5 = arith.constant 5 : index
    %c0_35 = arith.constant 0 : index
    %c0_36 = arith.constant 0 : index
    %52 = vector.load %arg3[%c5, %c0_35, %c0_36] : memref<7x128x128xf32, #tpu.memory_space<vmem>>, vector<1x128x128xf32>
    %53 = vector.shape_cast %52 : vector<1x128x128xf32> to vector<128x128xf32>
    %cst_37 = arith.constant dense<0.000000e+00> : vector<8x128xf32>
    %54 = tpu.matmul %51, %53, %cst_37 {dimension_numbers = #tpu.dot_dimension_numbers<[1], [0], [0], [1], [0, 0, 1, 1], [], []>} : vector<8x128xf32>, vector<128x128xf32>, vector<8x128xf32> -> vector<8x128xf32>
    %c5_38 = arith.constant 5 : index
    %c0_39 = arith.constant 0 : index
    %55 = vector.load %arg4[%c5_38, %c0_39] : memref<8x128xf32, #tpu.memory_space<vmem>>, vector<1x128xf32>
    %56 = vector.broadcast %55 : vector<1x128xf32> to vector<8x128xf32>
    %57 = arith.addf %54, %56 : vector<8x128xf32>
    %cst_40 = arith.constant 0.000000e+00 : f32
    %58 = vector.broadcast %cst_40 : f32 to vector<8x128xf32>
    %59 = arith.cmpf ogt, %57, %58 : vector<8x128xf32>
    %cst_41 = arith.constant 0.00999999977 : f32
    %60 = vector.broadcast %cst_41 : f32 to vector<8x128xf32>
    %61 = arith.mulf %60, %57 : vector<8x128xf32>
    %62 = arith.select %59, %57, %61 : vector<8x128xi1>, vector<8x128xf32>
    %c6 = arith.constant 6 : index
    %c0_42 = arith.constant 0 : index
    %c0_43 = arith.constant 0 : index
    %63 = vector.load %arg3[%c6, %c0_42, %c0_43] : memref<7x128x128xf32, #tpu.memory_space<vmem>>, vector<1x128x128xf32>
    %64 = vector.shape_cast %63 : vector<1x128x128xf32> to vector<128x128xf32>
    %cst_44 = arith.constant dense<0.000000e+00> : vector<8x128xf32>
    %65 = tpu.matmul %62, %64, %cst_44 {dimension_numbers = #tpu.dot_dimension_numbers<[1], [0], [0], [1], [0, 0, 1, 1], [], []>} : vector<8x128xf32>, vector<128x128xf32>, vector<8x128xf32> -> vector<8x128xf32>
    %c6_45 = arith.constant 6 : index
    %c0_46 = arith.constant 0 : index
    %66 = vector.load %arg4[%c6_45, %c0_46] : memref<8x128xf32, #tpu.memory_space<vmem>>, vector<1x128xf32>
    %67 = vector.broadcast %66 : vector<1x128xf32> to vector<8x128xf32>
    %68 = arith.addf %65, %67 : vector<8x128xf32>
    %cst_47 = arith.constant 0.000000e+00 : f32
    %69 = vector.broadcast %cst_47 : f32 to vector<8x128xf32>
    %70 = arith.maximumf %68, %69 : vector<8x128xf32>
    %71 = math.absf %68 : vector<8x128xf32>
    %cst_48 = arith.constant 0.000000e+00 : f32
    %72 = vector.broadcast %cst_48 : f32 to vector<8x128xf32>
    %73 = arith.subf %72, %71 : vector<8x128xf32>
    %74 = math.exp %73 : vector<8x128xf32>
    %75 = math.log1p %74 : vector<8x128xf32>
    %76 = arith.addf %70, %75 : vector<8x128xf32>
    %c0_49 = arith.constant 0 : index
    %c0_50 = arith.constant 0 : index
    %77 = vector.load %arg5[%c0_49, %c0_50] : memref<8x128xf32, #tpu.memory_space<vmem>>, vector<8x128xf32>
    tpu.vector_store %arg5[%c0_49, %c0_50], %76 {strides = array<i32>} : memref<8x128xf32, #tpu.memory_space<vmem>>, vector<8x128xf32>,
    return
  }
  func.func @transform_0(%arg0: i32) -> (i32, i32) {
    %c0_i32 = arith.constant 0 : i32
    %c0_i32_0 = arith.constant 0 : i32
    return %arg0, %c0_i32 : i32, i32
  }
  func.func @transform_1(%arg0: i32) -> (i32, i32) {
    %c0_i32 = arith.constant 0 : i32
    %c0_i32_0 = arith.constant 0 : i32
    return %arg0, %c0_i32 : i32, i32
  }
  func.func @transform_2(%arg0: i32) -> (i32, i32, i32) {
    %c0_i32 = arith.constant 0 : i32
    %c0_i32_0 = arith.constant 0 : i32
    %c0_i32_1 = arith.constant 0 : i32
    %c0_i32_2 = arith.constant 0 : i32
    return %c0_i32, %c0_i32_0, %c0_i32_1 : i32, i32, i32
  }
  func.func @transform_3(%arg0: i32) -> (i32, i32) {
    %c0_i32 = arith.constant 0 : i32
    %c0_i32_0 = arith.constant 0 : i32
    %c0_i32_1 = arith.constant 0 : i32
    return %c0_i32, %c0_i32_0 : i32, i32
  }
  func.func @transform_4(%arg0: i32) -> (i32, i32) {
    %c0_i32 = arith.constant 0 : i32
    %c0_i32_0 = arith.constant 0 : i32
    return %arg0, %c0_i32 : i32, i32
  }
}

</mosaic_0001>

<llo_original>
// kernel: tpu_custom_call.1
$region0: #{tpu_custom_call.1}
  #allocation0 [shape = 'u32[]', space=smem, size = 0x4, offset = 0x4, fixed_abs, tag = 'smem constant byte address 0x4 - core index']
  #allocation1 [shape = 'u32[144,128]{1,0:T(1,128)}', space=vmem, size = 0x12000, scoped, tag = 'internal scratch']
  %s0 = inlined_call_operand.hbm [shape: f32[8,128], index: 0, kind: input, shape index: {}]
  %s1 = inlined_call_operand.hbm [shape: f32[8,128], index: 1, kind: input, shape index: {}]
  %s2 = inlined_call_operand.hbm [shape: f32[7,128,128], index: 2, kind: input, shape index: {}]
  %s3 = inlined_call_operand.hbm [shape: f32[8,128], index: 3, kind: input, shape index: {}]
  %s4 = inlined_call_operand.hbm [shape: f32[8,128], index: 4, kind: output, shape index: {}]
  %s5 = sld [smem:[#allocation0]]
  $region42: #{tpu_custom_call.1} parent=0
    _
  %s7 = ssub.s32 1, %s5
  %s8 = scalar_select 0, %s7, %s5
  $region1: #{tpu_custom_call.1} parent=0
    #allocation2 [shape = 'u8[4096]{0}', space=vmem, size = 0x1000, scoped, tag = 'input window, operand 0, single buffered']
    #allocation3 [shape = 's32[1]{0}', space=sflag, size = 0x4, scoped, tag = 'scoped memory for tpu_custom_call.1']
    #allocation4 [shape = 's32[1]{0}', space=sflag, size = 0x4, scoped, tag = 'scoped memory for tpu_custom_call.1']
    #allocation5 [shape = 'u8[4096]{0}', space=vmem, size = 0x1000, scoped, tag = 'input window, operand 1, single buffered']
    #allocation6 [shape = 's32[1]{0}', space=sflag, size = 0x4, scoped, tag = 'scoped memory for tpu_custom_call.1']
    #allocation7 [shape = 'u8[458752]{0}', space=vmem, size = 0x70000, scoped, tag = 'input window, operand 2, single buffered']
    #allocation8 [shape = 'u8[4096]{0}', space=vmem, size = 0x1000, scoped, tag = 'input window, operand 3, single buffered']
    #allocation9 [shape = 's32[1]{0}', space=sflag, size = 0x4, scoped, tag = 'scoped memory for tpu_custom_call.1']
    #allocation10 [shape = 'u8[4096]{0}', space=vmem, size = 0x1000, scoped, tag = 'output window, operand 0, single buffered']
    %9 = vsyncpa [#allocation3], 0
    %10 = vsyncpa [#allocation6], 0
    %11 = vsyncpa [#allocation9], 0
    %12 = vsyncpa [#allocation4], 0
    // Predicated region
    $region2: #{tpu_custom_call.1} parent=1 // pred_check
      _
    $region3: #{tpu_custom_call.1} parent=1 // pred_check_branch
      %14 = sbr.rel (0) target = $region5
    $region4: #{tpu_custom_call.1} parent=1 // pred_region
      %s16 = ssub.s32 128, 128
      %17 = vsyncadd [#allocation3], %s16
      %s19 = sshll.u32 [#allocation2], 4
      %s20 = int_to_ptr.vmem [resolvable:$true] %s19
      %22 = dma.hbm_to_vmem [thread:$0]  %s0, 128, %s20, [#allocation3]
    $region5: #{tpu_custom_call.1} parent=1 // pred_fallthru
      _
    // Predicated region
    $region6: #{tpu_custom_call.1} parent=1 // pred_check
      _
    $region7: #{tpu_custom_call.1} parent=1 // pred_check_branch
      %24 = sbr.rel (0) target = $region9
    $region8: #{tpu_custom_call.1} parent=1 // pred_region
      %s26 = ssub.s32 128, 128
      %27 = vsyncadd [#allocation6], %s26
      %s29 = sshll.u32 [#allocation5], 4
      %s30 = int_to_ptr.vmem [resolvable:$true] %s29
      %32 = dma.hbm_to_vmem [thread:$0]  %s1, 128, %s30, [#allocation6]
    $region9: #{tpu_custom_call.1} parent=1 // pred_fallthru
      _
    // Predicated region
    $region10: #{tpu_custom_call.1} parent=1 // pred_check
      _
    $region11: #{tpu_custom_call.1} parent=1 // pred_check_branch
      %34 = sbr.rel (0) target = $region13
    $region12: #{tpu_custom_call.1} parent=1 // pred_region
      %s36 = ssub.s32 14336, 14336
      %37 = vsyncadd [#allocation6], %s36
      %s38 = sshll.u32 [#allocation7], 4
      %s39 = int_to_ptr.vmem [resolvable:$true] %s38
      %44 = dma.hbm_to_vmem [thread:$0]  %s2, 14336, %s39, [#allocation6], 128, 128, 8
    $region13: #{tpu_custom_call.1} parent=1 // pred_fallthru
      _
    // Predicated region
    $region14: #{tpu_custom_call.1} parent=1 // pred_check
      _
    $region15: #{tpu_custom_call.1} parent=1 // pred_check_branch
      %46 = sbr.rel (0) target = $region17
    $region16: #{tpu_custom_call.1} parent=1 // pred_region
      %s48 = ssub.s32 128, 128
      %49 = vsyncadd [#allocation9], %s48
      %s51 = sshll.u32 [#allocation8], 4
      %s52 = int_to_ptr.vmem [resolvable:$true] %s51
      %54 = dma.hbm_to_vmem [thread:$0]  %s3, 128, %s52, [#allocation9]
    $region17: #{tpu_custom_call.1} parent=1 // pred_fallthru
      _
    // Predicated region
    $region18: #{tpu_custom_call.1} parent=1 // pred_check
      _
    $region19: #{tpu_custom_call.1} parent=1 // pred_check_branch
      %56 = sbr.rel (0) target = $region21
    $region20: #{tpu_custom_call.1} parent=1 // pred_region
      %57 = dma.done [#allocation3], 128
    $region21: #{tpu_custom_call.1} parent=1 // pred_fallthru
      _
    // Predicated region
    $region22: #{tpu_custom_call.1} parent=1 // pred_check
      _
    $region23: #{tpu_custom_call.1} parent=1 // pred_check_branch
      %59 = sbr.rel (0) target = $region25
    $region24: #{tpu_custom_call.1} parent=1 // pred_region
      %60 = dma.done [#allocation6], 128
    $region25: #{tpu_custom_call.1} parent=1 // pred_fallthru
      _
    // Predicated region
    $region26: #{tpu_custom_call.1} parent=1 // pred_check
      _
    $region27: #{tpu_custom_call.1} parent=1 // pred_check_branch
      %62 = sbr.rel (0) target = $region29
    $region28: #{tpu_custom_call.1} parent=1 // pred_region
      %63 = dma.done [#allocation6], 14336
    $region29: #{tpu_custom_call.1} parent=1 // pred_fallthru
      _
    // Predicated region
    $region30: #{tpu_custom_call.1} parent=1 // pred_check
      _
    $region31: #{tpu_custom_call.1} parent=1 // pred_check_branch
      %65 = sbr.rel (0) target = $region33
    $region32: #{tpu_custom_call.1} parent=1 // pred_region
      %66 = dma.done [#allocation9], 128
    $region33: #{tpu_custom_call.1} parent=1 // pred_fallthru
      _
    %v67 = vld [vmem:[#allocation2] sm:$0xff]
    %v68 = vld [vmem:[#allocation7] sm:$0xff]
    %v69 = vld [vmem:[#allocation7 + $0x8] sm:$0xff]
    %v70 = vld [vmem:[#allocation7 + $0x10] sm:$0xff]
    %v71 = vld [vmem:[#allocation7 + $0x18] sm:$0xff]
    %v72 = vld [vmem:[#allocation7 + $0x20] sm:$0xff]
    %v73 = vld [vmem:[#allocation7 + $0x28] sm:$0xff]
    %v74 = vld [vmem:[#allocation7 + $0x30] sm:$0xff]
    %v75 = vld [vmem:[#allocation7 + $0x38] sm:$0xff]
    %v76 = vld [vmem:[#allocation7 + $0x40] sm:$0xff]
    %v77 = vld [vmem:[#allocation7 + $0x48] sm:$0xff]
    %v78 = vld [vmem:[#allocation7 + $0x50] sm:$0xff]
    %v79 = vld [vmem:[#allocation7 + $0x58] sm:$0xff]
    %v80 = vld [vmem:[#allocation7 + $0x60] sm:$0xff]
    %v81 = vld [vmem:[#allocation7 + $0x68] sm:$0xff]
    %v82 = vld [vmem:[#allocation7 + $0x70] sm:$0xff]
    %v83 = vld [vmem:[#allocation7 + $0x78] sm:$0xff]
    %v84 = vld [vmem:[#allocation8] sm:$0x1]
    %v85 = vlaneseq
    %v86 = vshrl.u32 %v85, 7
    %v87 = vsub.s32 0, %v86
    %v88 = vrot.slane %v84, %v87
    %89 = vmatprep.subr.mxu0 0.0
    %90 = vmatpush1.msra.mxu0 %v83
    %91 = vmatprep.subr.mxu0 0.0
    %92 = vmatpush1.msra.mxu0 %v82
    %93 = vmatprep.subr.mxu0 0.0
    %94 = vmatpush1.msra.mxu0 %v81
    %95 = vmatprep.subr.mxu0 0.0
    %96 = vmatpush1.msra.mxu0 %v80
    %97 = vmatprep.subr.mxu0 0.0
    %98 = vmatpush1.msra.mxu0 %v79
    %99 = vmatprep.subr.mxu0 0.0
    %100 = vmatpush1.msra.mxu0 %v78
    %101 = vmatprep.subr.mxu0 0.0
    %102 = vmatpush1.msra.mxu0 %v77
    %103 = vmatprep.subr.mxu0 0.0
    %104 = vmatpush1.msra.mxu0 %v76
    %105 = vmatprep.subr.mxu0 0.0
    %106 = vmatpush1.msra.mxu0 %v75
    %107 = vmatprep.subr.mxu0 0.0
    %108 = vmatpush1.msra.mxu0 %v74
    %109 = vmatprep.subr.mxu0 0.0
    %110 = vmatpush1.msra.mxu0 %v73
    %111 = vmatprep.subr.mxu0 0.0
    %112 = vmatpush1.msra.mxu0 %v72
    %113 = vmatprep.subr.mxu0 0.0
    %114 = vmatpush1.msra.mxu0 %v71
    %115 = vmatprep.subr.mxu0 0.0
    %116 = vmatpush1.msra.mxu0 %v70
    %117 = vmatprep.subr.mxu0 0.0
    %118 = vmatpush1.msra.mxu0 %v69
    %119 = vmatprep.subr.mxu0 0.0
    %120 = vmatpush1.msra.mxu0 %v68
    %121 = vmatprep.subr.mxu0 0.0
    %122 = vmatpush2.msra.mxu0 0.0
    %123 = vmatprep.subr.mxu0 0.0
    %124 = vmatpush2.msra.mxu0 0.0
    %125 = vmatprep.subr.mxu0 0.0
    %126 = vmatpush2.msra.mxu0 0.0
    %127 = vmatprep.subr.mxu0 0.0
    %128 = vmatpush2.msra.mxu0 0.0
    %129 = vmatprep.subr.mxu0 0.0
    %130 = vmatpush2.msra.mxu0 0.0
    %131 = vmatprep.subr.mxu0 0.0
    %132 = vmatpush2.msra.mxu0 0.0
    %133 = vmatprep.subr.mxu0 0.0
    %134 = vmatpush2.msra.mxu0 0.0
    %135 = vmatprep.subr.mxu0 0.0
    %136 = vmatpush2.msra.mxu0 0.0
    %137 = vmatprep.subr.mxu0 0.0
    %138 = vmatpush2.msra.mxu0 0.0
    %139 = vmatprep.subr.mxu0 0.0
    %140 = vmatpush2.msra.mxu0 0.0
    %141 = vmatprep.subr.mxu0 0.0
    %142 = vmatpush2.msra.mxu0 0.0
    %143 = vmatprep.subr.mxu0 0.0
    %144 = vmatpush2.msra.mxu0 0.0
    %145 = vmatprep.subr.mxu0 0.0
    %146 = vmatpush2.msra.mxu0 0.0
    %147 = vmatprep.subr.mxu0 0.0
    %148 = vmatpush2.msra.mxu0 0.0
    %149 = vmatprep.subr.mxu0 0.0
    %150 = vmatpush2.msra.mxu0 0.0
    %151 = vmatprep.subr.mxu0 0.0
    %152 = vmatpush2.msra.mxu0 0.0
    %153 = vmatprep.mubr.f32.mxu0 0.0
    %154 = vmatmul.mubr.f32.gmra.mxu0 %v67
    %v155 = vpop.f32.mrf.mxu0
    %v156 = vadd.f32 %v88, %v155
    %v157 = vpop.f32.mrf.mxu0
    %158 = vdwg.mxu0
    %vm159 = vcmp.gt.f32.partialorder %v156, 0.0
    %v160 = vmul.f32 %v156, 0.01
    %v161 = vsel %vm159, %v156, %v160
    %s162 = scalar_lea.vmem [#allocation7], 128
    %v163 = vld [vmem:[%s162] sm:$0xff]
    %v164 = vld [vmem:[%s162 + $0x8] sm:$0xff]
    %v165 = vld [vmem:[%s162 + $0x10] sm:$0xff]
    %v166 = vld [vmem:[%s162 + $0x18] sm:$0xff]
    %v167 = vld [vmem:[%s162 + $0x20] sm:$0xff]
    %v168 = vld [vmem:[%s162 + $0x28] sm:$0xff]
    %v169 = vld [vmem:[%s162 + $0x30] sm:$0xff]
    %v170 = vld [vmem:[%s162 + $0x38] sm:$0xff]
    %v171 = vld [vmem:[%s162 + $0x40] sm:$0xff]
    %v172 = vld [vmem:[%s162 + $0x48] sm:$0xff]
    %v173 = vld [vmem:[%s162 + $0x50] sm:$0xff]
    %v174 = vld [vmem:[%s162 + $0x58] sm:$0xff]
    %v175 = vld [vmem:[%s162 + $0x60] sm:$0xff]
    %v176 = vld [vmem:[%s162 + $0x68] sm:$0xff]
    %v177 = vld [vmem:[%s162 + $0x70] sm:$0xff]
    %v178 = vld [vmem:[%s162 + $0x78] sm:$0xff]
    %v179 = vld [vmem:[#allocation8 + $0x1] sm:$0x1]
    %v180 = vlaneseq
    %v181 = vshrl.u32 %v180, 7
    %v182 = vsub.s32 0, %v181
    %v183 = vrot.slane %v179, %v182
    %184 = vmatprep.subr.mxu0 0.0
    %185 = vmatpush1.msra.mxu0 %v178
    %186 = vmatprep.subr.mxu0 0.0
    %187 = vmatpush1.msra.mxu0 %v177
    %188 = vmatprep.subr.mxu0 0.0
    %189 = vmatpush1.msra.mxu0 %v176
    %190 = vmatprep.subr.mxu0 0.0
    %191 = vmatpush1.msra.mxu0 %v175
    %192 = vmatprep.subr.mxu0 0.0
    %193 = vmatpush1.msra.mxu0 %v174
    %194 = vmatprep.subr.mxu0 0.0
    %195 = vmatpush1.msra.mxu0 %v173
    %196 = vmatprep.subr.mxu0 0.0
    %197 = vmatpush1.msra.mxu0 %v172
    %198 = vmatprep.subr.mxu0 0.0
    %199 = vmatpush1.msra.mxu0 %v171
    %200 = vmatprep.subr.mxu0 0.0
    %201 = vmatpush1.msra.mxu0 %v170
    %202 = vmatprep.subr.mxu0 0.0
    %203 = vmatpush1.msra.mxu0 %v169
    %204 = vmatprep.subr.mxu0 0.0
    %205 = vmatpush1.msra.mxu0 %v168
    %206 = vmatprep.subr.mxu0 0.0
    %207 = vmatpush1.msra.mxu0 %v167
    %208 = vmatprep.subr.mxu0 0.0
    %209 = vmatpush1.msra.mxu0 %v166
    %210 = vmatprep.subr.mxu0 0.0
    %211 = vmatpush1.msra.mxu0 %v165
    %212 = vmatprep.subr.mxu0 0.0
    %213 = vmatpush1.msra.mxu0 %v164
    %214 = vmatprep.subr.mxu0 0.0
    %215 = vmatpush1.msra.mxu0 %v163
    %216 = vmatprep.subr.mxu0 0.0
    %217 = vmatpush2.msra.mxu0 0.0
    %218 = vmatprep.subr.mxu0 0.0
    %219 = vmatpush2.msra.mxu0 0.0
    %220 = vmatprep.subr.mxu0 0.0
    %221 = vmatpush2.msra.mxu0 0.0
    %222 = vmatprep.subr.mxu0 0.0
    %223 = vmatpush2.msra.mxu0 0.0
    %224 = vmatprep.subr.mxu0 0.0
    %225 = vmatpush2.msra.mxu0 0.0
    %226 = vmatprep.subr.mxu0 0.0
    %227 = vmatpush2.msra.mxu0 0.0
    %228 = vmatprep.subr.mxu0 0.0
    %229 = vmatpush2.msra.mxu0 0.0
    %230 = vmatprep.subr.mxu0 0.0
    %231 = vmatpush2.msra.mxu0 0.0
    %232 = vmatprep.subr.mxu0 0.0
    %233 = vmatpush2.msra.mxu0 0.0
    %234 = vmatprep.subr.mxu0 0.0
    %235 = vmatpush2.msra.mxu0 0.0
    %236 = vmatprep.subr.mxu0 0.0
    %237 = vmatpush2.msra.mxu0 0.0
    %238 = vmatprep.subr.mxu0 0.0
    %239 = vmatpush2.msra.mxu0 0.0
    %240 = vmatprep.subr.mxu0 0.0
    %241 = vmatpush2.msra.mxu0 0.0
    %242 = vmatprep.subr.mxu0 0.0
    %243 = vmatpush2.msra.mxu0 0.0
    %244 = vmatprep.subr.mxu0 0.0
    %245 = vmatpush2.msra.mxu0 0.0
    %246 = vmatprep.subr.mxu0 0.0
    %247 = vmatpush2.msra.mxu0 0.0
    %248 = vmatprep.mubr.f32.mxu0 0.0
    %249 = vmatmul.mubr.f32.gmra.mxu0 %v161
    %v250 = vpop.f32.mrf.mxu0
    %v251 = vadd.f32 %v183, %v250
    %v252 = vpop.f32.mrf.mxu0
    %253 = vdwg.mxu0
    %vm254 = vcmp.gt.f32.partialorder %v251, 0.0
    %v255 = vmul.f32 %v251, 0.01
    %v256 = vsel %vm254, %v251, %v255
    %s257 = scalar_lea.vmem [#allocation7], 256
    %v258 = vld [vmem:[%s257] sm:$0xff]
    %v259 = vld [vmem:[%s257 + $0x8] sm:$0xff]
    %v260 = vld [vmem:[%s257 + $0x10] sm:$0xff]
    %v261 = vld [vmem:[%s257 + $0x18] sm:$0xff]
    %v262 = vld [vmem:[%s257 + $0x20] sm:$0xff]
    %v263 = vld [vmem:[%s257 + $0x28] sm:$0xff]
    %v264 = vld [vmem:[%s257 + $0x30] sm:$0xff]
    %v265 = vld [vmem:[%s257 + $0x38] sm:$0xff]
    %v266 = vld [vmem:[%s257 + $0x40] sm:$0xff]
    %v267 = vld [vmem:[%s257 + $0x48] sm:$0xff]
    %v268 = vld [vmem:[%s257 + $0x50] sm:$0xff]
    %v269 = vld [vmem:[%s257 + $0x58] sm:$0xff]
    %v270 = vld [vmem:[%s257 + $0x60] sm:$0xff]
    %v271 = vld [vmem:[%s257 + $0x68] sm:$0xff]
    %v272 = vld [vmem:[%s257 + $0x70] sm:$0xff]
    %v273 = vld [vmem:[%s257 + $0x78] sm:$0xff]
    %v274 = vld [vmem:[#allocation8 + $0x2] sm:$0x1]
    %v275 = vlaneseq
    %v276 = vshrl.u32 %v275, 7
    %v277 = vsub.s32 0, %v276
    %v278 = vrot.slane %v274, %v277
    %279 = vmatprep.subr.mxu0 0.0
    %280 = vmatpush1.msra.mxu0 %v273
    %281 = vmatprep.subr.mxu0 0.0
    %282 = vmatpush1.msra.mxu0 %v272
    %283 = vmatprep.subr.mxu0 0.0
    %284 = vmatpush1.msra.mxu0 %v271
    %285 = vmatprep.subr.mxu0 0.0
    %286 = vmatpush1.msra.mxu0 %v270
    %287 = vmatprep.subr.mxu0 0.0
    %288 = vmatpush1.msra.mxu0 %v269
    %289 = vmatprep.subr.mxu0 0.0
    %290 = vmatpush1.msra.mxu0 %v268
    %291 = vmatprep.subr.mxu0 0.0
    %292 = vmatpush1.msra.mxu0 %v267
    %293 = vmatprep.subr.mxu0 0.0
    %294 = vmatpush1.msra.mxu0 %v266
    %295 = vmatprep.subr.mxu0 0.0
    %296 = vmatpush1.msra.mxu0 %v265
    %297 = vmatprep.subr.mxu0 0.0
    %298 = vmatpush1.msra.mxu0 %v264
    %299 = vmatprep.subr.mxu0 0.0
    %300 = vmatpush1.msra.mxu0 %v263
    %301 = vmatprep.subr.mxu0 0.0
    %302 = vmatpush1.msra.mxu0 %v262
    %303 = vmatprep.subr.mxu0 0.0
    %304 = vmatpush1.msra.mxu0 %v261
    %305 = vmatprep.subr.mxu0 0.0
    %306 = vmatpush1.msra.mxu0 %v260
    %307 = vmatprep.subr.mxu0 0.0
    %308 = vmatpush1.msra.mxu0 %v259
    %309 = vmatprep.subr.mxu0 0.0
    %310 = vmatpush1.msra.mxu0 %v258
    %311 = vmatprep.subr.mxu0 0.0
    %312 = vmatpush2.msra.mxu0 0.0
    %313 = vmatprep.subr.mxu0 0.0
    %314 = vmatpush2.msra.mxu0 0.0
    %315 = vmatprep.subr.mxu0 0.0
    %316 = vmatpush2.msra.mxu0 0.0
    %317 = vmatprep.subr.mxu0 0.0
    %318 = vmatpush2.msra.mxu0 0.0
    %319 = vmatprep.subr.mxu0 0.0
    %320 = vmatpush2.msra.mxu0 0.0
    %321 = vmatprep.subr.mxu0 0.0
    %322 = vmatpush2.msra.mxu0 0.0
    %323 = vmatprep.subr.mxu0 0.0
    %324 = vmatpush2.msra.mxu0 0.0
    %325 = vmatprep.subr.mxu0 0.0
    %326 = vmatpush2.msra.mxu0 0.0
    %327 = vmatprep.subr.mxu0 0.0
    %328 = vmatpush2.msra.mxu0 0.0
    %329 = vmatprep.subr.mxu0 0.0
    %330 = vmatpush2.msra.mxu0 0.0
    %331 = vmatprep.subr.mxu0 0.0
    %332 = vmatpush2.msra.mxu0 0.0
    %333 = vmatprep.subr.mxu0 0.0
    %334 = vmatpush2.msra.mxu0 0.0
    %335 = vmatprep.subr.mxu0 0.0
    %336 = vmatpush2.msra.mxu0 0.0
    %337 = vmatprep.subr.mxu0 0.0
    %338 = vmatpush2.msra.mxu0 0.0
    %339 = vmatprep.subr.mxu0 0.0
    %340 = vmatpush2.msra.mxu0 0.0
    %341 = vmatprep.subr.mxu0 0.0
    %342 = vmatpush2.msra.mxu0 0.0
    %343 = vmatprep.mubr.f32.mxu0 0.0
    %344 = vmatmul.mubr.f32.gmra.mxu0 %v256
    %v345 = vpop.f32.mrf.mxu0
    %v346 = vadd.f32 %v278, %v345
    %v347 = vpop.f32.mrf.mxu0
    %348 = vdwg.mxu0
    %s349 = scalar_lea.vmem [#allocation7], 384
    %v350 = vld [vmem:[%s349] sm:$0xff]
    %v351 = vld [vmem:[%s349 + $0x8] sm:$0xff]
    %v352 = vld [vmem:[%s349 + $0x10] sm:$0xff]
    %v353 = vld [vmem:[%s349 + $0x18] sm:$0xff]
    %v354 = vld [vmem:[%s349 + $0x20] sm:$0xff]
    %v355 = vld [vmem:[%s349 + $0x28] sm:$0xff]
    %v356 = vld [vmem:[%s349 + $0x30] sm:$0xff]
    %v357 = vld [vmem:[%s349 + $0x38] sm:$0xff]
    %v358 = vld [vmem:[%s349 + $0x40] sm:$0xff]
    %v359 = vld [vmem:[%s349 + $0x48] sm:$0xff]
    %v360 = vld [vmem:[%s349 + $0x50] sm:$0xff]
    %v361 = vld [vmem:[%s349 + $0x58] sm:$0xff]
    %v362 = vld [vmem:[%s349 + $0x60] sm:$0xff]
    %v363 = vld [vmem:[%s349 + $0x68] sm:$0xff]
    %v364 = vld [vmem:[%s349 + $0x70] sm:$0xff]
    %v365 = vld [vmem:[%s349 + $0x78] sm:$0xff]
    %v366 = vld [vmem:[#allocation8 + $0x3] sm:$0x1]
    %v367 = vlaneseq
    %v368 = vshrl.u32 %v367, 7
    %v369 = vsub.s32 0, %v368
    %v370 = vrot.slane %v366, %v369
    %371 = vmatprep.subr.mxu0 0.0
    %372 = vmatpush1.msra.mxu0 %v365
    %373 = vmatprep.subr.mxu0 0.0
    %374 = vmatpush1.msra.mxu0 %v364
    %375 = vmatprep.subr.mxu0 0.0
    %376 = vmatpush1.msra.mxu0 %v363
    %377 = vmatprep.subr.mxu0 0.0
    %378 = vmatpush1.msra.mxu0 %v362
    %379 = vmatprep.subr.mxu0 0.0
    %380 = vmatpush1.msra.mxu0 %v361
    %381 = vmatprep.subr.mxu0 0.0
    %382 = vmatpush1.msra.mxu0 %v360
    %383 = vmatprep.subr.mxu0 0.0
    %384 = vmatpush1.msra.mxu0 %v359
    %385 = vmatprep.subr.mxu0 0.0
    %386 = vmatpush1.msra.mxu0 %v358
    %387 = vmatprep.subr.mxu0 0.0
    %388 = vmatpush1.msra.mxu0 %v357
    %389 = vmatprep.subr.mxu0 0.0
    %390 = vmatpush1.msra.mxu0 %v356
    %391 = vmatprep.subr.mxu0 0.0
    %392 = vmatpush1.msra.mxu0 %v355
    %393 = vmatprep.subr.mxu0 0.0
    %394 = vmatpush1.msra.mxu0 %v354
    %395 = vmatprep.subr.mxu0 0.0
    %396 = vmatpush1.msra.mxu0 %v353
    %397 = vmatprep.subr.mxu0 0.0
    %398 = vmatpush1.msra.mxu0 %v352
    %399 = vmatprep.subr.mxu0 0.0
    %400 = vmatpush1.msra.mxu0 %v351
    %401 = vmatprep.subr.mxu0 0.0
    %402 = vmatpush1.msra.mxu0 %v350
    %403 = vmatprep.subr.mxu0 0.0
    %404 = vmatpush2.msra.mxu0 0.0
    %405 = vmatprep.subr.mxu0 0.0
    %406 = vmatpush2.msra.mxu0 0.0
    %407 = vmatprep.subr.mxu0 0.0
    %408 = vmatpush2.msra.mxu0 0.0
    %409 = vmatprep.subr.mxu0 0.0
    %410 = vmatpush2.msra.mxu0 0.0
    %411 = vmatprep.subr.mxu0 0.0
    %412 = vmatpush2.msra.mxu0 0.0
    %413 = vmatprep.subr.mxu0 0.0
    %414 = vmatpush2.msra.mxu0 0.0
    %415 = vmatprep.subr.mxu0 0.0
    %416 = vmatpush2.msra.mxu0 0.0
    %417 = vmatprep.subr.mxu0 0.0
    %418 = vmatpush2.msra.mxu0 0.0
    %419 = vmatprep.subr.mxu0 0.0
    %420 = vmatpush2.msra.mxu0 0.0
    %421 = vmatprep.subr.mxu0 0.0
    %422 = vmatpush2.msra.mxu0 0.0
    %423 = vmatprep.subr.mxu0 0.0
    %424 = vmatpush2.msra.mxu0 0.0
    %425 = vmatprep.subr.mxu0 0.0
    %426 = vmatpush2.msra.mxu0 0.0
    %427 = vmatprep.subr.mxu0 0.0
    %428 = vmatpush2.msra.mxu0 0.0
    %429 = vmatprep.subr.mxu0 0.0
    %430 = vmatpush2.msra.mxu0 0.0
    %431 = vmatprep.subr.mxu0 0.0
    %432 = vmatpush2.msra.mxu0 0.0
    %433 = vmatprep.subr.mxu0 0.0
    %434 = vmatpush2.msra.mxu0 0.0
    %435 = vmatprep.mubr.f32.mxu0 0.0
    %436 = vmatmul.mubr.f32.gmra.mxu0 %v256
    %v437 = vpop.f32.mrf.mxu0
    %v438 = vadd.f32 %v370, %v437
    %v439 = vpop.f32.mrf.mxu0
    %440 = vdwg.mxu0
    %v441 = vld [vmem:[#allocation5] sm:$0xff]
    %v442 = vmul.f32 %v438, 0.5
    %v443 = vmul.f32 %v442, 1.442695
    %v444 = vpow.pop %v443
    %v445 = vmul.f32 %v441, %v444
    %v446 = vadd.f32 %v346, %v445
    %s447 = scalar_lea.vmem [#allocation7], 512
    %v448 = vld [vmem:[%s447] sm:$0xff]
    %v449 = vld [vmem:[%s447 + $0x8] sm:$0xff]
    %v450 = vld [vmem:[%s447 + $0x10] sm:$0xff]
    %v451 = vld [vmem:[%s447 + $0x18] sm:$0xff]
    %v452 = vld [vmem:[%s447 + $0x20] sm:$0xff]
    %v453 = vld [vmem:[%s447 + $0x28] sm:$0xff]
    %v454 = vld [vmem:[%s447 + $0x30] sm:$0xff]
    %v455 = vld [vmem:[%s447 + $0x38] sm:$0xff]
    %v456 = vld [vmem:[%s447 + $0x40] sm:$0xff]
    %v457 = vld [vmem:[%s447 + $0x48] sm:$0xff]
    %v458 = vld [vmem:[%s447 + $0x50] sm:$0xff]
    %v459 = vld [vmem:[%s447 + $0x58] sm:$0xff]
    %v460 = vld [vmem:[%s447 + $0x60] sm:$0xff]
    %v461 = vld [vmem:[%s447 + $0x68] sm:$0xff]
    %v462 = vld [vmem:[%s447 + $0x70] sm:$0xff]
    %v463 = vld [vmem:[%s447 + $0x78] sm:$0xff]
    %v464 = vld [vmem:[#allocation8 + $0x4] sm:$0x1]
    %v465 = vlaneseq
    %v466 = vshrl.u32 %v465, 7
    %v467 = vsub.s32 0, %v466
    %v468 = vrot.slane %v464, %v467
    %469 = vmatprep.subr.mxu0 0.0
    %470 = vmatpush1.msra.mxu0 %v463
    %471 = vmatprep.subr.mxu0 0.0
    %472 = vmatpush1.msra.mxu0 %v462
    %473 = vmatprep.subr.mxu0 0.0
    %474 = vmatpush1.msra.mxu0 %v461
    %475 = vmatprep.subr.mxu0 0.0
    %476 = vmatpush1.msra.mxu0 %v460
    %477 = vmatprep.subr.mxu0 0.0
    %478 = vmatpush1.msra.mxu0 %v459
    %479 = vmatprep.subr.mxu0 0.0
    %480 = vmatpush1.msra.mxu0 %v458
    %481 = vmatprep.subr.mxu0 0.0
    %482 = vmatpush1.msra.mxu0 %v457
    %483 = vmatprep.subr.mxu0 0.0
    %484 = vmatpush1.msra.mxu0 %v456
    %485 = vmatprep.subr.mxu0 0.0
    %486 = vmatpush1.msra.mxu0 %v455
    %487 = vmatprep.subr.mxu0 0.0
    %488 = vmatpush1.msra.mxu0 %v454
    %489 = vmatprep.subr.mxu0 0.0
    %490 = vmatpush1.msra.mxu0 %v453
    %491 = vmatprep.subr.mxu0 0.0
    %492 = vmatpush1.msra.mxu0 %v452
    %493 = vmatprep.subr.mxu0 0.0
    %494 = vmatpush1.msra.mxu0 %v451
    %495 = vmatprep.subr.mxu0 0.0
    %496 = vmatpush1.msra.mxu0 %v450
    %497 = vmatprep.subr.mxu0 0.0
    %498 = vmatpush1.msra.mxu0 %v449
    %499 = vmatprep.subr.mxu0 0.0
    %500 = vmatpush1.msra.mxu0 %v448
    %501 = vmatprep.subr.mxu0 0.0
    %502 = vmatpush2.msra.mxu0 0.0
    %503 = vmatprep.subr.mxu0 0.0
    %504 = vmatpush2.msra.mxu0 0.0
    %505 = vmatprep.subr.mxu0 0.0
    %506 = vmatpush2.msra.mxu0 0.0
    %507 = vmatprep.subr.mxu0 0.0
    %508 = vmatpush2.msra.mxu0 0.0
    %509 = vmatprep.subr.mxu0 0.0
    %510 = vmatpush2.msra.mxu0 0.0
    %511 = vmatprep.subr.mxu0 0.0
    %512 = vmatpush2.msra.mxu0 0.0
    %513 = vmatprep.subr.mxu0 0.0
    %514 = vmatpush2.msra.mxu0 0.0
    %515 = vmatprep.subr.mxu0 0.0
    %516 = vmatpush2.msra.mxu0 0.0
    %517 = vmatprep.subr.mxu0 0.0
    %518 = vmatpush2.msra.mxu0 0.0
    %519 = vmatprep.subr.mxu0 0.0
    %520 = vmatpush2.msra.mxu0 0.0
    %521 = vmatprep.subr.mxu0 0.0
    %522 = vmatpush2.msra.mxu0 0.0
    %523 = vmatprep.subr.mxu0 0.0
    %524 = vmatpush2.msra.mxu0 0.0
    %525 = vmatprep.subr.mxu0 0.0
    %526 = vmatpush2.msra.mxu0 0.0
    %527 = vmatprep.subr.mxu0 0.0
    %528 = vmatpush2.msra.mxu0 0.0
    %529 = vmatprep.subr.mxu0 0.0
    %530 = vmatpush2.msra.mxu0 0.0
    %531 = vmatprep.subr.mxu0 0.0
    %532 = vmatpush2.msra.mxu0 0.0
    %533 = vmatprep.mubr.f32.mxu0 0.0
    %534 = vmatmul.mubr.f32.gmra.mxu0 %v446
    %v535 = vpop.f32.mrf.mxu0
    %v536 = vadd.f32 %v468, %v535
    %v537 = vpop.f32.mrf.mxu0
    %538 = vdwg.mxu0
    %vm539 = vcmp.gt.f32.partialorder %v536, 0.0
    %v540 = vmul.f32 %v536, 0.01
    %v541 = vsel %vm539, %v536, %v540
    %s542 = scalar_lea.vmem [#allocation7], 640
    %v543 = vld [vmem:[%s542] sm:$0xff]
    %v544 = vld [vmem:[%s542 + $0x8] sm:$0xff]
    %v545 = vld [vmem:[%s542 + $0x10] sm:$0xff]
    %v546 = vld [vmem:[%s542 + $0x18] sm:$0xff]
    %v547 = vld [vmem:[%s542 + $0x20] sm:$0xff]
    %v548 = vld [vmem:[%s542 + $0x28] sm:$0xff]
    %v549 = vld [vmem:[%s542 + $0x30] sm:$0xff]
    %v550 = vld [vmem:[%s542 + $0x38] sm:$0xff]
    %v551 = vld [vmem:[%s542 + $0x40] sm:$0xff]
    %v552 = vld [vmem:[%s542 + $0x48] sm:$0xff]
    %v553 = vld [vmem:[%s542 + $0x50] sm:$0xff]
    %v554 = vld [vmem:[%s542 + $0x58] sm:$0xff]
    %v555 = vld [vmem:[%s542 + $0x60] sm:$0xff]
    %v556 = vld [vmem:[%s542 + $0x68] sm:$0xff]
    %v557 = vld [vmem:[%s542 + $0x70] sm:$0xff]
    %v558 = vld [vmem:[%s542 + $0x78] sm:$0xff]
    %v559 = vld [vmem:[#allocation8 + $0x5] sm:$0x1]
    %v560 = vlaneseq
    %v561 = vshrl.u32 %v560, 7
    %v562 = vsub.s32 0, %v561
    %v563 = vrot.slane %v559, %v562
    %564 = vmatprep.subr.mxu0 0.0
    %565 = vmatpush1.msra.mxu0 %v558
    %566 = vmatprep.subr.mxu0 0.0
    %567 = vmatpush1.msra.mxu0 %v557
    %568 = vmatprep.subr.mxu0 0.0
    %569 = vmatpush1.msra.mxu0 %v556
    %570 = vmatprep.subr.mxu0 0.0
    %571 = vmatpush1.msra.mxu0 %v555
    %572 = vmatprep.subr.mxu0 0.0
    %573 = vmatpush1.msra.mxu0 %v554
    %574 = vmatprep.subr.mxu0 0.0
    %575 = vmatpush1.msra.mxu0 %v553
    %576 = vmatprep.subr.mxu0 0.0
    %577 = vmatpush1.msra.mxu0 %v552
    %578 = vmatprep.subr.mxu0 0.0
    %579 = vmatpush1.msra.mxu0 %v551
    %580 = vmatprep.subr.mxu0 0.0
    %581 = vmatpush1.msra.mxu0 %v550
    %582 = vmatprep.subr.mxu0 0.0
    %583 = vmatpush1.msra.mxu0 %v549
    %584 = vmatprep.subr.mxu0 0.0
    %585 = vmatpush1.msra.mxu0 %v548
    %586 = vmatprep.subr.mxu0 0.0
    %587 = vmatpush1.msra.mxu0 %v547
    %588 = vmatprep.subr.mxu0 0.0
    %589 = vmatpush1.msra.mxu0 %v546
    %590 = vmatprep.subr.mxu0 0.0
    %591 = vmatpush1.msra.mxu0 %v545
    %592 = vmatprep.subr.mxu0 0.0
    %593 = vmatpush1.msra.mxu0 %v544
    %594 = vmatprep.subr.mxu0 0.0
    %595 = vmatpush1.msra.mxu0 %v543
    %596 = vmatprep.subr.mxu0 0.0
    %597 = vmatpush2.msra.mxu0 0.0
    %598 = vmatprep.subr.mxu0 0.0
    %599 = vmatpush2.msra.mxu0 0.0
    %600 = vmatprep.subr.mxu0 0.0
    %601 = vmatpush2.msra.mxu0 0.0
    %602 = vmatprep.subr.mxu0 0.0
    %603 = vmatpush2.msra.mxu0 0.0
    %604 = vmatprep.subr.mxu0 0.0
    %605 = vmatpush2.msra.mxu0 0.0
    %606 = vmatprep.subr.mxu0 0.0
    %607 = vmatpush2.msra.mxu0 0.0
    %608 = vmatprep.subr.mxu0 0.0
    %609 = vmatpush2.msra.mxu0 0.0
    %610 = vmatprep.subr.mxu0 0.0
    %611 = vmatpush2.msra.mxu0 0.0
    %612 = vmatprep.subr.mxu0 0.0
    %613 = vmatpush2.msra.mxu0 0.0
    %614 = vmatprep.subr.mxu0 0.0
    %615 = vmatpush2.msra.mxu0 0.0
    %616 = vmatprep.subr.mxu0 0.0
    %617 = vmatpush2.msra.mxu0 0.0
    %618 = vmatprep.subr.mxu0 0.0
    %619 = vmatpush2.msra.mxu0 0.0
    %620 = vmatprep.subr.mxu0 0.0
    %621 = vmatpush2.msra.mxu0 0.0
    %622 = vmatprep.subr.mxu0 0.0
    %623 = vmatpush2.msra.mxu0 0.0
    %624 = vmatprep.subr.mxu0 0.0
    %625 = vmatpush2.msra.mxu0 0.0
    %626 = vmatprep.subr.mxu0 0.0
    %627 = vmatpush2.msra.mxu0 0.0
    %628 = vmatprep.mubr.f32.mxu0 0.0
    %629 = vmatmul.mubr.f32.gmra.mxu0 %v541
    %v630 = vpop.f32.mrf.mxu0
    %v631 = vadd.f32 %v563, %v630
    %v632 = vpop.f32.mrf.mxu0
    %633 = vdwg.mxu0
    %vm634 = vcmp.gt.f32.partialorder %v631, 0.0
    %v635 = vmul.f32 %v631, 0.01
    %v636 = vsel %vm634, %v631, %v635
    %s637 = scalar_lea.vmem [#allocation7], 768
    %v638 = vld [vmem:[%s637] sm:$0xff]
    %v639 = vld [vmem:[%s637 + $0x8] sm:$0xff]
    %v640 = vld [vmem:[%s637 + $0x10] sm:$0xff]
    %v641 = vld [vmem:[%s637 + $0x18] sm:$0xff]
    %v642 = vld [vmem:[%s637 + $0x20] sm:$0xff]
    %v643 = vld [vmem:[%s637 + $0x28] sm:$0xff]
    %v644 = vld [vmem:[%s637 + $0x30] sm:$0xff]
    %v645 = vld [vmem:[%s637 + $0x38] sm:$0xff]
    %v646 = vld [vmem:[%s637 + $0x40] sm:$0xff]
    %v647 = vld [vmem:[%s637 + $0x48] sm:$0xff]
    %v648 = vld [vmem:[%s637 + $0x50] sm:$0xff]
    %v649 = vld [vmem:[%s637 + $0x58] sm:$0xff]
    %v650 = vld [vmem:[%s637 + $0x60] sm:$0xff]
    %v651 = vld [vmem:[%s637 + $0x68] sm:$0xff]
    %v652 = vld [vmem:[%s637 + $0x70] sm:$0xff]
    %v653 = vld [vmem:[%s637 + $0x78] sm:$0xff]
    %v654 = vld [vmem:[#allocation8 + $0x6] sm:$0x1]
    %v655 = vlaneseq
    %v656 = vshrl.u32 %v655, 7
    %v657 = vsub.s32 0, %v656
    %v658 = vrot.slane %v654, %v657
    %659 = vmatprep.subr.mxu0 0.0
    %660 = vmatpush1.msra.mxu0 %v653
    %661 = vmatprep.subr.mxu0 0.0
    %662 = vmatpush1.msra.mxu0 %v652
    %663 = vmatprep.subr.mxu0 0.0
    %664 = vmatpush1.msra.mxu0 %v651
    %665 = vmatprep.subr.mxu0 0.0
    %666 = vmatpush1.msra.mxu0 %v650
    %667 = vmatprep.subr.mxu0 0.0
    %668 = vmatpush1.msra.mxu0 %v649
    %669 = vmatprep.subr.mxu0 0.0
    %670 = vmatpush1.msra.mxu0 %v648
    %671 = vmatprep.subr.mxu0 0.0
    %672 = vmatpush1.msra.mxu0 %v647
    %673 = vmatprep.subr.mxu0 0.0
    %674 = vmatpush1.msra.mxu0 %v646
    %675 = vmatprep.subr.mxu0 0.0
    %676 = vmatpush1.msra.mxu0 %v645
    %677 = vmatprep.subr.mxu0 0.0
    %678 = vmatpush1.msra.mxu0 %v644
    %679 = vmatprep.subr.mxu0 0.0
    %680 = vmatpush1.msra.mxu0 %v643
    %681 = vmatprep.subr.mxu0 0.0
    %682 = vmatpush1.msra.mxu0 %v642
    %683 = vmatprep.subr.mxu0 0.0
    %684 = vmatpush1.msra.mxu0 %v641
    %685 = vmatprep.subr.mxu0 0.0
    %686 = vmatpush1.msra.mxu0 %v640
    %687 = vmatprep.subr.mxu0 0.0
    %688 = vmatpush1.msra.mxu0 %v639
    %689 = vmatprep.subr.mxu0 0.0
    %690 = vmatpush1.msra.mxu0 %v638
    %691 = vmatprep.subr.mxu0 0.0
    %692 = vmatpush2.msra.mxu0 0.0
    %693 = vmatprep.subr.mxu0 0.0
    %694 = vmatpush2.msra.mxu0 0.0
    %695 = vmatprep.subr.mxu0 0.0
    %696 = vmatpush2.msra.mxu0 0.0
    %697 = vmatprep.subr.mxu0 0.0
    %698 = vmatpush2.msra.mxu0 0.0
    %699 = vmatprep.subr.mxu0 0.0
    %700 = vmatpush2.msra.mxu0 0.0
    %701 = vmatprep.subr.mxu0 0.0
    %702 = vmatpush2.msra.mxu0 0.0
    %703 = vmatprep.subr.mxu0 0.0
    %704 = vmatpush2.msra.mxu0 0.0
    %705 = vmatprep.subr.mxu0 0.0
    %706 = vmatpush2.msra.mxu0 0.0
    %707 = vmatprep.subr.mxu0 0.0
    %708 = vmatpush2.msra.mxu0 0.0
    %709 = vmatprep.subr.mxu0 0.0
    %710 = vmatpush2.msra.mxu0 0.0
    %711 = vmatprep.subr.mxu0 0.0
    %712 = vmatpush2.msra.mxu0 0.0
    %713 = vmatprep.subr.mxu0 0.0
    %714 = vmatpush2.msra.mxu0 0.0
    %715 = vmatprep.subr.mxu0 0.0
    %716 = vmatpush2.msra.mxu0 0.0
    %717 = vmatprep.subr.mxu0 0.0
    %718 = vmatpush2.msra.mxu0 0.0
    %719 = vmatprep.subr.mxu0 0.0
    %720 = vmatpush2.msra.mxu0 0.0
    %721 = vmatprep.subr.mxu0 0.0
    %722 = vmatpush2.msra.mxu0 0.0
    %723 = vmatprep.mubr.f32.mxu0 0.0
    %724 = vmatmul.mubr.f32.gmra.mxu0 %v636
    %v725 = vpop.f32.mrf.mxu0
    %v726 = vadd.f32 %v658, %v725
    %v727 = vpop.f32.mrf.mxu0
    %728 = vdwg.mxu0
    %v729 = vmax.f32 %v726, 0.0
    %v730 = vand.u32 2147483647, %v726
    %v731 = vsub.f32 0.0, %v730
    %v732 = vmul.f32 %v731, 1.442695
    %v733 = vpow.pop %v732
    %v734 = vadd.f32 %v733, 1.0
    %v735 = vlog2.pop %v734
    %v736 = vmul.f32 %v735, 0.6931472
    %v737 = vmul.f32 -0.5, %v733
    %v738 = vadd.f32 %v737, 1.0
    %v739 = vmul.f32 %v738, %v733
    %v740 = vand.u32 2147483647, %v733
    %vm741 = vcmp.lt.f32.partialorder %v740, 0.0004427343
    %v742 = vsel %vm741, %v739, %v736
    %v743 = vadd.f32 %v729, %v742
    %744 = vst [vmem:[#allocation10] sm:$0xff] %v743
    // Predicated region
    $region34: #{tpu_custom_call.1} parent=1 // pred_check
      _
    $region35: #{tpu_custom_call.1} parent=1 // pred_check_branch
      %746 = sbr.rel (0) target = $region37
    $region36: #{tpu_custom_call.1} parent=1 // pred_region
      %s748 = ssub.s32 128, 128
      %749 = vsyncadd [#allocation4], %s748
      %s751 = sshll.u32 [#allocation10], 4
      %s752 = int_to_ptr.vmem [resolvable:$true] %s751
      %754 = dma.vmem_to_hbm [thread:$0]  %s752, 128, %s4, [#allocation4]
    $region37: #{tpu_custom_call.1} parent=1 // pred_fallthru
      _
    // Predicated region
    $region38: #{tpu_custom_call.1} parent=1 // pred_check
      _
    $region39: #{tpu_custom_call.1} parent=1 // pred_check_branch
      %756 = sbr.rel (0) target = $region41
    $region40: #{tpu_custom_call.1} parent=1 // pred_region
      %757 = dma.done [#allocation4], 128
    $region41: #{tpu_custom_call.1} parent=1 // pred_fallthru
      _
    %758 = vsyncpa [#allocation3], 1
    %759 = vsyncpa [#allocation6], 1
    %760 = vsyncpa [#allocation9], 1
    %761 = vsyncpa [#allocation4], 1

</llo_original>
